<compile_context>
chip_gen: v6e
topology: v6e:2x2x1
jax: 0.10.0
libtpu: 0.0.40
codegen_flags: <defaults>
</compile_context>

<pallas_src>
import functools

import jax
import jax.numpy as jnp
from jax.experimental import pallas as pl
from jax.experimental.pallas import tpu as pltpu


def _round_up(x, m):
    return (x + m - 1) // m * m


def _sharpen_kernel(x_ref, prev_ref, next_ref, o_ref, *, lane_shift: int):
    """cv2.filter2D(img, -1, [[-1,-1,-1],[-1,9,-1],[-1,-1,-1]]) on one row tile.

    x_ref    : (TH, Wp) uint8.  Lanes are (w, c)-flattened; the lane padding
               already holds the reflect-101 column halos, so the horizontal
               stencil needs no edge selects.
    prev_ref : (8, Wp) uint8 block above the tile (row 7 = top halo row); for
               tile 0 it is block 0 and row 1 is the reflect-101 halo.
    next_ref : (8, Wp) uint8 block below the tile (row 0 = bottom halo row);
               for the last tile it is the last block and row 6 (= Hp-2) is
               the reflect-101 halo when the image ends on a tile edge.
    o_ref    : (TH, Wp) uint8, saturated like cv2's uint8 output.
    """
    r = pl.program_id(0)
    nr = pl.num_programs(0)
    th, wp = x_ref.shape

    x = x_ref[...].astype(jnp.float32)

    # Vertical 3-tap sum via circular sublane rolls (XLU slot).  Rows 0 and
    # TH-1 wrap to the wrong rows; they are recomputed with the true halo
    # rows below and overwritten in the output.
    v = x + pltpu.roll(x, shift=1, axis=0) + pltpu.roll(x, shift=th - 1, axis=0)

    def hbox(vv):
        # Horizontal 3-tap sum via circular lane rolls by one pixel (C lanes).
        # The wrapper put the reflect-101 column halos in the lane padding, so
        # the circular wrap lands on valid data at columns 0 and W-1.
        return (vv
                + pltpu.roll(vv, shift=lane_shift, axis=1)
                + pltpu.roll(vv, shift=wp - lane_shift, axis=1))

    # sharpen == 10 * center - 3x3 box; integer weights on u8-valued inputs,
    # so f32 math is exact and clip+cast == cv2 saturate_cast.
    y = 10.0 * x - hbox(v)
    o_ref[...] = jnp.clip(y, 0.0, 255.0).astype(jnp.uint8)

    # ---- fix the two tile-boundary rows (tiny 1-row recompute each).
    top = jnp.where(r == 0,
                    prev_ref[1:2, :],          # reflect-101: row -1 -> row 1
                    prev_ref[7:8, :]).astype(jnp.float32)
    v0 = top + x[0:1, :] + x[1:2, :]
    y0 = 10.0 * x[0:1, :] - hbox(v0)
    o_ref[0:1, :] = jnp.clip(y0, 0.0, 255.0).astype(jnp.uint8)

    bot = jnp.where(r == nr - 1,
                    next_ref[6:7, :],          # reflect-101 when image ends on tile edge
                    next_ref[0:1, :]).astype(jnp.float32)
    vl = x[th - 2:th - 1, :] + x[th - 1:th, :] + bot
    yl = 10.0 * x[th - 1:th, :] - hbox(vl)
    o_ref[th - 1:th, :] = jnp.clip(yl, 0.0, 255.0).astype(jnp.uint8)


def image_enhancer_forward(img_hwc_u8):
    """Deterministic ImageEnhancer.forward: sharpen -> flip_horizontal."""
    H, W, C = img_hwc_u8.shape
    assert H >= 2 and W >= 2, "reflect-101 border needs at least 2 rows/cols"

    wf = W * C
    # Lane-dense width with >= 2*C spare lanes for the two column halos.
    wp = _round_up(wf + 2 * C, 128)

    # Row-tile height: ~12 MiB of f32 temporaries per tile, sublane aligned,
    # capped at 256, and never larger than the (padded) image (small-image
    # fast path: one grid step).
    th = max(8, min(256, (12 * 1024 * 1024) // (20 * wp) // 8 * 8))
    th = min(th, _round_up(H, 8))
    nr = pl.cdiv(H, th)
    hp = nr * th
    t8, nb8 = th // 8, hp // 8

    # ---- single fused input pass: flip_horizontal (sharpen commutes with the
    # flip), flatten (w, c) onto lanes, append the reflect-101 column halos
    # into the lane padding, pad rows to a tile multiple (first padded row =
    # reflect row H-2 so row H-1's stencil stays exact).
    y = img_hwc_u8[:, ::-1, :]                                   # cv2.flip(img, 1)
    parts = [y.reshape(H, wf),
             y[:, W - 2, :],                                     # right halo: col W-2
             jnp.zeros((H, wp - wf - 2 * C), jnp.uint8),
             y[:, 1, :]]                                         # left halo: col 1
    x2d = jnp.concatenate([p for p in parts if p.shape[1] > 0], axis=1)
    if hp > H:
        rows = [x2d, x2d[H - 2:H - 1, :]]                        # reflect row H-2
        if hp - H - 1 > 0:
            rows.append(jnp.zeros((hp - H - 1, wp), jnp.uint8))
        x2d = jnp.concatenate(rows, axis=0)

    # VMEM estimate: double-buffered u8 I/O + halo blocks + ~6 f32 temporaries.
    vmem_est = 4 * th * wp + 4 * 8 * wp + 6 * th * wp * 4
    vmem_limit = int(min(48 * 1024 * 1024, max(16 * 1024 * 1024, 2 * vmem_est)))

    out = pl.pallas_call(
        functools.partial(_sharpen_kernel, lane_shift=C),
        out_shape=jax.ShapeDtypeStruct((hp, wp), jnp.uint8),
        grid=(nr,),
        in_specs=[
            pl.BlockSpec((th, wp), lambda r: (r, 0)),
            # 8-row halo blocks just above / below the tile (clamped at the
            # image edges; the in-kernel row select handles the reflect).
            pl.BlockSpec((8, wp), lambda r: (jnp.maximum(r * t8 - 1, 0), 0)),
            pl.BlockSpec((8, wp), lambda r: (jnp.minimum((r + 1) * t8, nb8 - 1), 0)),
        ],
        out_specs=pl.BlockSpec((th, wp), lambda r: (r, 0)),
        compiler_params=pltpu.CompilerParams(
            # Row tiles are independent: shard them across v7x's two TCs.
            dimension_semantics=("parallel",),
            vmem_limit_bytes=vmem_limit,
        ),
    )(x2d, x2d, x2d)

    # Strip lane/row padding and restore HWC (single output pass; reshape free).
    return out[:H, :wf].reshape(H, W, C)


def _reference_forward(img_hwc_u8):
    """Pure-jnp reference: cv2-style sharpen (reflect-101) then flip_h."""
    H, W, _ = img_hwc_u8.shape
    x = img_hwc_u8.astype(jnp.float32)
    xp = jnp.pad(x, ((1, 1), (1, 1), (0, 0)), mode="reflect")  # BORDER_REFLECT_101
    k = ((-1.0, -1.0, -1.0), (-1.0, 9.0, -1.0), (-1.0, -1.0, -1.0))
    acc = jnp.zeros_like(x)
    for dy in range(3):
        for dx in range(3):
            acc = acc + k[dy][dx] * xp[dy : dy + H, dx : dx + W, :]
    sharp = jnp.clip(acc, 0.0, 255.0).astype(jnp.uint8)
    return sharp[:, ::-1, :]                                    # cv2.flip(img, 1)


if __name__ == "__main__":
    key = jax.random.PRNGKey(0)
    H, W, C = 16, 20, 3  # small HWC BGR image, like a cv2 uint8 frame
    img = jax.random.randint(key, (H, W, C), 0, 256, dtype=jnp.int32).astype(jnp.uint8)

    out = jax.block_until_ready(image_enhancer_forward(img))

    assert out.shape == (H, W, C)
    assert out.dtype == jnp.uint8

    expected = jax.block_until_ready(_reference_forward(img))
    assert bool(jnp.array_equal(out, expected)), "Pallas output != reference"

    print("KERNEL_OK")
</pallas_src>

<mosaic_0001>
module attributes {stable_mosaic.version = 11 : i64} {
  func.func @_sharpen_kernel(%arg0: i32, %arg1: memref<16x128xi8, #tpu.memory_space<vmem>>, %arg2: memref<8x128xi8, #tpu.memory_space<vmem>>, %arg3: memref<8x128xi8, #tpu.memory_space<vmem>>, %arg4: memref<16x128xi8, #tpu.memory_space<vmem>>) attributes {dimension_semantics = [#tpu.dimension_semantics<parallel>], iteration_bounds = array<i64: 1>, scalar_prefetch = 0 : i64, scratch_operands = 0 : i64, tpu.core_type = #tpu.core_type<tc>, window_params = [{transform_indices = @transform_0, window_bounds = array<i64: 16, 128>}, {transform_indices = @transform_1, window_bounds = array<i64: 8, 128>}, {transform_indices = @transform_2, window_bounds = array<i64: 8, 128>}, {transform_indices = @transform_3, window_bounds = array<i64: 16, 128>}]} {
    %c0 = arith.constant 0 : index
    %c0_0 = arith.constant 0 : index
    %0 = vector.load %arg1[%c0, %c0_0] : memref<16x128xi8, #tpu.memory_space<vmem>>, vector<16x128xi8>
    %1 = arith.uitofp %0 : vector<16x128xi8> to vector<16x128xf32>
    %c1_i32 = arith.constant 1 : i32
    %2 = tpu.dynamic_rotate %1 by %c1_i32 dim 0 : vector<16x128xf32>, i32 -> vector<16x128xf32>
    %3 = arith.addf %1, %2 : vector<16x128xf32>
    %c15_i32 = arith.constant 15 : i32
    %4 = tpu.dynamic_rotate %1 by %c15_i32 dim 0 : vector<16x128xf32>, i32 -> vector<16x128xf32>
    %5 = arith.addf %3, %4 : vector<16x128xf32>
    %cst = arith.constant 1.000000e+01 : f32
    %6 = vector.broadcast %cst : f32 to vector<16x128xf32>
    %7 = arith.mulf %6, %1 : vector<16x128xf32>
    %c3_i32 = arith.constant 3 : i32
    %8 = tpu.dynamic_rotate %5 by %c3_i32 dim 1 : vector<16x128xf32>, i32 -> vector<16x128xf32>
    %9 = arith.addf %5, %8 : vector<16x128xf32>
    %c125_i32 = arith.constant 125 : i32
    %10 = tpu.dynamic_rotate %5 by %c125_i32 dim 1 : vector<16x128xf32>, i32 -> vector<16x128xf32>
    %11 = arith.addf %9, %10 : vector<16x128xf32>
    %12 = arith.subf %7, %11 : vector<16x128xf32>
    %cst_1 = arith.constant 0.000000e+00 : f32
    %cst_2 = arith.constant 2.550000e+02 : f32
    %13 = vector.broadcast %cst_1 : f32 to vector<16x128xf32>
    %14 = arith.maximumf %13, %12 : vector<16x128xf32>
    %15 = vector.broadcast %cst_2 : f32 to vector<16x128xf32>
    %16 = arith.minimumf %15, %14 : vector<16x128xf32>
    %17 = arith.fptoui %16 : vector<16x128xf32> to vector<16x128xi8>
    %c0_3 = arith.constant 0 : index
    %c0_4 = arith.constant 0 : index
    %18 = vector.load %arg4[%c0_3, %c0_4] : memref<16x128xi8, #tpu.memory_space<vmem>>, vector<16x128xi8>
    tpu.vector_store %arg4[%c0_3, %c0_4], %17 {strides = array<i32>} : memref<16x128xi8, #tpu.memory_space<vmem>>, vector<16x128xi8>,
    %c0_i32 = arith.constant 0 : i32
    %19 = arith.cmpi eq, %arg0, %c0_i32 : i32
    %c1 = arith.constant 1 : index
    %c0_5 = arith.constant 0 : index
    %20 = vector.load %arg2[%c1, %c0_5] : memref<8x128xi8, #tpu.memory_space<vmem>>, vector<1x128xi8>
    %c7 = arith.constant 7 : index
    %c0_6 = arith.constant 0 : index
    %21 = vector.load %arg2[%c7, %c0_6] : memref<8x128xi8, #tpu.memory_space<vmem>>, vector<1x128xi8>
    %22 = arith.select %19, %20, %21 : vector<1x128xi8>
    %23 = arith.uitofp %22 : vector<1x128xi8> to vector<1x128xf32>
    %24 = vector.extract_strided_slice %1 {offsets = [0, 0], sizes = [1, 128], strides = [1, 1]} : vector<16x128xf32> to vector<1x128xf32>
    %25 = arith.addf %23, %24 : vector<1x128xf32>
    %26 = vector.extract_strided_slice %1 {offsets = [1, 0], sizes = [1, 128], strides = [1, 1]} : vector<16x128xf32> to vector<1x128xf32>
    %27 = arith.addf %25, %26 : vector<1x128xf32>
    %28 = vector.extract_strided_slice %1 {offsets = [0, 0], sizes = [1, 128], strides = [1, 1]} : vector<16x128xf32> to vector<1x128xf32>
    %cst_7 = arith.constant 1.000000e+01 : f32
    %29 = vector.broadcast %cst_7 : f32 to vector<1x128xf32>
    %30 = arith.mulf %29, %28 : vector<1x128xf32>
    %c3_i32_8 = arith.constant 3 : i32
    %31 = tpu.dynamic_rotate %27 by %c3_i32_8 dim 1 : vector<1x128xf32>, i32 -> vector<1x128xf32>
    %32 = arith.addf %27, %31 : vector<1x128xf32>
    %c125_i32_9 = arith.constant 125 : i32
    %33 = tpu.dynamic_rotate %27 by %c125_i32_9 dim 1 : vector<1x128xf32>, i32 -> vector<1x128xf32>
    %34 = arith.addf %32, %33 : vector<1x128xf32>
    %35 = arith.subf %30, %34 : vector<1x128xf32>
    %cst_10 = arith.constant 0.000000e+00 : f32
    %cst_11 = arith.constant 2.550000e+02 : f32
    %36 = vector.broadcast %cst_10 : f32 to vector<1x128xf32>
    %37 = arith.maximumf %36, %35 : vector<1x128xf32>
    %38 = vector.broadcast %cst_11 : f32 to vector<1x128xf32>
    %39 = arith.minimumf %38, %37 : vector<1x128xf32>
    %40 = arith.fptoui %39 : vector<1x128xf32> to vector<1x128xi8>
    %c0_12 = arith.constant 0 : index
    %c0_13 = arith.constant 0 : index
    %41 = vector.load %arg4[%c0_12, %c0_13] : memref<16x128xi8, #tpu.memory_space<vmem>>, vector<1x128xi8>
    tpu.vector_store %arg4[%c0_12, %c0_13], %40 {strides = array<i32>} : memref<16x128xi8, #tpu.memory_space<vmem>>, vector<1x128xi8>,
    %c0_i32_14 = arith.constant 0 : i32
    %42 = arith.cmpi eq, %arg0, %c0_i32_14 : i32
    %c6 = arith.constant 6 : index
    %c0_15 = arith.constant 0 : index
    %43 = vector.load %arg3[%c6, %c0_15] : memref<8x128xi8, #tpu.memory_space<vmem>>, vector<1x128xi8>
    %c0_16 = arith.constant 0 : index
    %c0_17 = arith.constant 0 : index
    %44 = vector.load %arg3[%c0_16, %c0_17] : memref<8x128xi8, #tpu.memory_space<vmem>>, vector<1x128xi8>
    %45 = arith.select %42, %43, %44 : vector<1x128xi8>
    %46 = arith.uitofp %45 : vector<1x128xi8> to vector<1x128xf32>
    %47 = vector.extract_strided_slice %1 {offsets = [14, 0], sizes = [1, 128], strides = [1, 1]} : vector<16x128xf32> to vector<1x128xf32>
    %48 = vector.extract_strided_slice %1 {offsets = [15, 0], sizes = [1, 128], strides = [1, 1]} : vector<16x128xf32> to vector<1x128xf32>
    %49 = arith.addf %47, %48 : vector<1x128xf32>
    %50 = arith.addf %49, %46 : vector<1x128xf32>
    %51 = vector.extract_strided_slice %1 {offsets = [15, 0], sizes = [1, 128], strides = [1, 1]} : vector<16x128xf32> to vector<1x128xf32>
    %cst_18 = arith.constant 1.000000e+01 : f32
    %52 = vector.broadcast %cst_18 : f32 to vector<1x128xf32>
    %53 = arith.mulf %52, %51 : vector<1x128xf32>
    %c3_i32_19 = arith.constant 3 : i32
    %54 = tpu.dynamic_rotate %50 by %c3_i32_19 dim 1 : vector<1x128xf32>, i32 -> vector<1x128xf32>
    %55 = arith.addf %50, %54 : vector<1x128xf32>
    %c125_i32_20 = arith.constant 125 : i32
    %56 = tpu.dynamic_rotate %50 by %c125_i32_20 dim 1 : vector<1x128xf32>, i32 -> vector<1x128xf32>
    %57 = arith.addf %55, %56 : vector<1x128xf32>
    %58 = arith.subf %53, %57 : vector<1x128xf32>
    %cst_21 = arith.constant 0.000000e+00 : f32
    %cst_22 = arith.constant 2.550000e+02 : f32
    %59 = vector.broadcast %cst_21 : f32 to vector<1x128xf32>
    %60 = arith.maximumf %59, %58 : vector<1x128xf32>
    %61 = vector.broadcast %cst_22 : f32 to vector<1x128xf32>
    %62 = arith.minimumf %61, %60 : vector<1x128xf32>
    %63 = arith.fptoui %62 : vector<1x128xf32> to vector<1x128xi8>
    %c15 = arith.constant 15 : index
    %c0_23 = arith.constant 0 : index
    %64 = vector.load %arg4[%c15, %c0_23] : memref<16x128xi8, #tpu.memory_space<vmem>>, vector<1x128xi8>
    tpu.vector_store %arg4[%c15, %c0_23], %63 {strides = array<i32>} : memref<16x128xi8, #tpu.memory_space<vmem>>, vector<1x128xi8>,
    return
  }
  func.func @transform_0(%arg0: i32) -> (i32, i32) {
    %c0_i32 = arith.constant 0 : i32
    %c0_i32_0 = arith.constant 0 : i32
    return %arg0, %c0_i32 : i32, i32
  }
  func.func @transform_1(%arg0: i32) -> (i32, i32) {
    %c2_i32 = arith.constant 2 : i32
    %0 = arith.muli %arg0, %c2_i32 : i32
    %c1_i32 = arith.constant 1 : i32
    %1 = arith.subi %0, %c1_i32 : i32
    %c0_i32 = arith.constant 0 : i32
    %2 = arith.maxsi %1, %c0_i32 : i32
    %c0_i32_0 = arith.constant 0 : i32
    %c0_i32_1 = arith.constant 0 : i32
    return %2, %c0_i32_0 : i32, i32
  }
  func.func @transform_2(%arg0: i32) -> (i32, i32) {
    %c1_i32 = arith.constant 1 : i32
    %0 = arith.addi %arg0, %c1_i32 : i32
    %c2_i32 = arith.constant 2 : i32
    %1 = arith.muli %0, %c2_i32 : i32
    %c1_i32_0 = arith.constant 1 : i32
    %2 = arith.minsi %1, %c1_i32_0 : i32
    %c0_i32 = arith.constant 0 : i32
    %c0_i32_1 = arith.constant 0 : i32
    return %2, %c0_i32 : i32, i32
  }
  func.func @transform_3(%arg0: i32) -> (i32, i32) {
    %c0_i32 = arith.constant 0 : i32
    %c0_i32_0 = arith.constant 0 : i32
    return %arg0, %c0_i32 : i32, i32
  }
}

</mosaic_0001>

<llo_original>
// kernel: tpu_custom_call.1
$region0: #{tpu_custom_call.1}
  #allocation0 [shape = 'u32[]', space=smem, size = 0x4, offset = 0x4, fixed_abs, tag = 'smem constant byte address 0x4 - core index']
  #allocation1 [shape = 'u32[144,128]{1,0:T(1,128)}', space=vmem, size = 0x12000, scoped, tag = 'internal scratch']
  %s0 = inlined_call_operand.hbm [shape: u8[16,128], index: 0, kind: input, shape index: {}]
  %s1 = inlined_call_operand.hbm [shape: u8[16,128], index: 1, kind: input, shape index: {}]
  %s2 = inlined_call_operand.hbm [shape: u8[16,128], index: 2, kind: input, shape index: {}]
  %s3 = inlined_call_operand.hbm [shape: u8[16,128], index: 3, kind: output, shape index: {}]
  %s4 = sld [smem:[#allocation0]]
  $region34: #{tpu_custom_call.1} parent=0
    _
  %s6 = ssub.s32 1, %s4
  %s7 = scalar_select 0, %s6, %s4
  $region1: #{tpu_custom_call.1} parent=0
    #allocation2 [shape = 'u8[2048]{0}', space=vmem, size = 0x800, scoped, tag = 'input window, operand 0, single buffered']
    #allocation3 [shape = 's32[1]{0}', space=sflag, size = 0x4, scoped, tag = 'scoped memory for tpu_custom_call.1']
    #allocation4 [shape = 's32[1]{0}', space=sflag, size = 0x4, scoped, tag = 'scoped memory for tpu_custom_call.1']
    #allocation5 [shape = 'u8[1024]{0}', space=vmem, size = 0x400, scoped, tag = 'input window, operand 1, single buffered']
    #allocation6 [shape = 's32[1]{0}', space=sflag, size = 0x4, scoped, tag = 'scoped memory for tpu_custom_call.1']
    #allocation7 [shape = 'u8[1024]{0}', space=vmem, size = 0x400, scoped, tag = 'input window, operand 2, single buffered']
    #allocation8 [shape = 'u8[2048]{0}', space=vmem, size = 0x800, scoped, tag = 'output window, operand 0, single buffered']
    %8 = vsyncpa [#allocation3], 0
    %9 = vsyncpa [#allocation6], 0
    %10 = vsyncpa [#allocation4], 0
    // Predicated region
    $region2: #{tpu_custom_call.1} parent=1 // pred_check
      _
    $region3: #{tpu_custom_call.1} parent=1 // pred_check_branch
      %12 = sbr.rel (0) target = $region5
    $region4: #{tpu_custom_call.1} parent=1 // pred_region
      %s14 = ssub.s32 64, 64
      %15 = vsyncadd [#allocation3], %s14
      %s16 = sshll.u32 [#allocation2], 4
      %s17 = int_to_ptr.vmem [resolvable:$true] %s16
      %22 = dma.hbm_to_vmem [thread:$0]  %s0, 64, %s17, [#allocation3], 32, 32, 2
    $region5: #{tpu_custom_call.1} parent=1 // pred_fallthru
      _
    // Predicated region
    $region6: #{tpu_custom_call.1} parent=1 // pred_check
      _
    $region7: #{tpu_custom_call.1} parent=1 // pred_check_branch
      %24 = sbr.rel (0) target = $region9
    $region8: #{tpu_custom_call.1} parent=1 // pred_region
      %s25 = smul.u32 0, 2
      %s26 = ssub.s32 %s25, 1
      %p27 = scmp.gt.s32.totalorder %s26, 0
      %s28 = scalar_select %p27, %s26, 0
      %s30 = ssub.s32 32, 32
      %31 = vsyncadd [#allocation6], %s30
      %s32 = smul.addr %s28, 32
      %s33 = scalar_lea.hbm %s1, %s32
      %s35 = sshll.u32 [#allocation5], 4
      %s36 = int_to_ptr.vmem [resolvable:$true] %s35
      %38 = dma.hbm_to_vmem [thread:$0]  %s33, 32, %s36, [#allocation6]
    $region9: #{tpu_custom_call.1} parent=1 // pred_fallthru
      _
    // Predicated region
    $region10: #{tpu_custom_call.1} parent=1 // pred_check
      _
    $region11: #{tpu_custom_call.1} parent=1 // pred_check_branch
      %40 = sbr.rel (0) target = $region13
    $region12: #{tpu_custom_call.1} parent=1 // pred_region
      %s41 = sadd.s32 0, 1
      %s42 = smul.u32 %s41, 2
      %p43 = scmp.lt.s32.totalorder %s42, 1
      %s44 = scalar_select %p43, %s42, 1
      %s46 = ssub.s32 32, 32
      %47 = vsyncadd [#allocation6], %s46
      %s48 = smul.addr %s44, 32
      %s49 = scalar_lea.hbm %s2, %s48
      %s51 = sshll.u32 [#allocation7], 4
      %s52 = int_to_ptr.vmem [resolvable:$true] %s51
      %54 = dma.hbm_to_vmem [thread:$0]  %s49, 32, %s52, [#allocation6]
    $region13: #{tpu_custom_call.1} parent=1 // pred_fallthru
      _
    // Predicated region
    $region14: #{tpu_custom_call.1} parent=1 // pred_check
      _
    $region15: #{tpu_custom_call.1} parent=1 // pred_check_branch
      %56 = sbr.rel (0) target = $region17
    $region16: #{tpu_custom_call.1} parent=1 // pred_region
      %57 = dma.done [#allocation3], 64
    $region17: #{tpu_custom_call.1} parent=1 // pred_fallthru
      _
    // Predicated region
    $region18: #{tpu_custom_call.1} parent=1 // pred_check
      _
    $region19: #{tpu_custom_call.1} parent=1 // pred_check_branch
      %59 = sbr.rel (0) target = $region21
    $region20: #{tpu_custom_call.1} parent=1 // pred_region
      %60 = dma.done [#allocation6], 32
    $region21: #{tpu_custom_call.1} parent=1 // pred_fallthru
      _
    // Predicated region
    $region22: #{tpu_custom_call.1} parent=1 // pred_check
      _
    $region23: #{tpu_custom_call.1} parent=1 // pred_check_branch
      %62 = sbr.rel (0) target = $region25
    $region24: #{tpu_custom_call.1} parent=1 // pred_region
      %63 = dma.done [#allocation6], 32
    $region25: #{tpu_custom_call.1} parent=1 // pred_fallthru
      _
    %s64 = smul.u32 0, 2
    %s65 = ssub.s32 %s64, 1
    %p66 = scmp.gt.s32.totalorder %s65, 0
    %s67 = scalar_select %p66, %s65, 0
    %s68 = sadd.s32 0, 1
    %s69 = smul.u32 %s68, 2
    %p70 = scmp.lt.s32.totalorder %s69, 1
    %s71 = scalar_select %p70, %s69, 1
    %v72 = vld [vmem:[#allocation2] sm:$0x3]
    %v73 = vld [vmem:[#allocation2 + $0x2] sm:$0x3]
    %v74 = vunpack.c.0.s8 %v72
    %v75 = vunpack.c.0.s8 %v73
    %v76 = vand.u32 %v74, 255
    %v77 = vand.u32 %v75, 255
    %v78 = vcvt.s32.f32 %v76
    %v79 = vcvt.s32.f32 %v77
    %v80 = vrot.slane %v78, 7
    %v81 = vrot.slane %v79, 7
    %v82 = vlaneseq
    %v83 = vshrl.u32 %v82, 7
    %vm84 = vcmp.lt.s32.totalorder %v83, 1
    %v85 = vsel %vm84, %v80, %v81
    %v86 = vsel %vm84, %v81, %v80
    %v87 = vadd.f32 %v78, %v86
    %v88 = vadd.f32 %v79, %v85
    %v89 = vrot.slane %v78, 1
    %v90 = vrot.slane %v79, 1
    %vm91 = vcmp.lt.s32.totalorder %v83, 7
    %v92 = vsel %vm91, %v89, %v90
    %v93 = vsel %vm91, %v90, %v89
    %v94 = vadd.f32 %v87, %v92
    %v95 = vadd.f32 %v88, %v93
    %v96 = vmul.f32 %v78, 10.0
    %v97 = vmul.f32 %v79, 10.0
    %98 = vrot.lane.b32.xlu0 %v94, 3
    %v99 = vpop.permute.xlu0 %98
    %100 = vrot.lane.b32.xlu0 %v95, 3
    %v101 = vpop.permute.xlu0 %100
    %v102 = vadd.f32 %v94, %v99
    %v103 = vadd.f32 %v95, %v101
    %104 = vrot.lane.b32.xlu0 %v94, 125
    %v105 = vpop.permute.xlu0 %104
    %106 = vrot.lane.b32.xlu0 %v95, 125
    %v107 = vpop.permute.xlu0 %106
    %v108 = vadd.f32 %v102, %v105
    %v109 = vadd.f32 %v103, %v107
    %v110 = vsub.f32 %v96, %v108
    %v111 = vsub.f32 %v97, %v109
    %v112 = vmax.f32 %v110, 0.0
    %v113 = vmax.f32 %v111, 0.0
    %v114 = vmin.f32 %v112, 255.0
    %v115 = vmin.f32 %v113, 255.0
    %v116 = vmax.f32 %v114, 0.0
    %v117 = vmax.f32 %v115, 0.0
    %v118 = vmin.f32 %v116, 255.0
    %v119 = vmin.f32 %v117, 255.0
    %v120 = vcvt.f32.s32.to.zero.pseudo %v118
    %v121 = vcvt.f32.s32.to.zero.pseudo %v119
    %v122 = vpack.c.b16 %v120, %v120
    %v123 = vpack.c.b8 %v122, %v122
    %v124 = vpack.c.b16 %v121, %v121
    %v125 = vpack.c.b8 %v124, %v124
    %126 = vst [vmem:[#allocation8] sm:$0x3] %v123
    %127 = vst [vmem:[#allocation8 + $0x2] sm:$0x3] %v125
    %p128 = scmp.eq.s32.totalorder 0, 0
    %v129 = vld [vmem:[#allocation5] sm:$0x1]
    %v130 = vld [vmem:[#allocation5] sm:$0x2]
    %s131 = scalar_select %p128, 1, 0
    %v132 = vstv %s131
    %vm133 = vcmp.eq.s32.totalorder %v132, 1
    %v135 = vshrl.u32 %v130, 16
    %v137 = vrot.slane %v135, 7
    %v138 = vrot.slane %v137, 2
    %v139 = vsel %vm133, %v129, %v138
    %v140 = vunpack.c.0.s8 %v139
    %v141 = vand.u32 %v140, 255
    %v142 = vcvt.s32.f32 %v141
    %v144 = vrot.slane %v78, 7
    %v146 = vadd.f32 %v142, %v144
    %v147 = vadd.f32 %v146, %v78
    %v149 = vrot.slane %v147, 1
    %151 = vrot.lane.b32.xlu0 %v149, 3
    %v152 = vpop.permute.xlu0 %151
    %v154 = vrot.slane %v152, 7
    %v156 = vadd.f32 %v147, %v154
    %157 = vrot.lane.b32.xlu0 %v149, 125
    %v158 = vpop.permute.xlu0 %157
    %v160 = vrot.slane %v158, 7
    %v162 = vadd.f32 %v156, %v160
    %v164 = vrot.slane %v162, 1
    %v166 = vsub.f32 %v96, %v164
    %v167 = vmax.f32 %v166, 0.0
    %v168 = vmin.f32 %v167, 255.0
    %v169 = vmax.f32 %v168, 0.0
    %v170 = vmin.f32 %v169, 255.0
    %v171 = vcvt.f32.s32.to.zero.pseudo %v170
    %v172 = vpack.c.b16 %v171, %v171
    %v173 = vpack.c.b8 %v172, %v172
    %vm174 = vcmask 1040384
    %vm175 = vsmask.f32 0
    %vm176 = vmand %vm174, %vm175
    %v177 = vld [vmem:[#allocation8] sm:$0x1]
    %v178 = vsel %vm176, %v173, %v177
    %179 = vst [vmem:[#allocation8] sm:$0x1] %v178
    %v180 = vld [vmem:[#allocation7] sm:$0x2]
    %v181 = vld [vmem:[#allocation7] sm:$0x1]
    %v183 = vshll.u32 %v181, 16
    %v185 = vrot.slane %v183, 7
    %v186 = vsel %vm133, %v180, %v185
    %v187 = vunpack.c.0.s8 %v186
    %v188 = vand.u32 %v187, 255
    %v189 = vcvt.s32.f32 %v188
    %v191 = vrot.slane %v79, 1
    %v193 = vadd.f32 %v79, %v191
    %v194 = vadd.f32 %v193, %v189
    %v196 = vrot.slane %v194, 6
    %198 = vrot.lane.b32.xlu0 %v196, 3
    %v199 = vpop.permute.xlu0 %198
    %v201 = vrot.slane %v199, 2
    %v203 = vadd.f32 %v194, %v201
    %204 = vrot.lane.b32.xlu0 %v196, 125
    %v205 = vpop.permute.xlu0 %204
    %v207 = vrot.slane %v205, 2
    %v209 = vadd.f32 %v203, %v207
    %v211 = vrot.slane %v209, 7
    %v213 = vsub.f32 %v97, %v211
    %v214 = vmax.f32 %v213, 0.0
    %v215 = vmin.f32 %v214, 255.0
    %v216 = vmax.f32 %v215, 0.0
    %v217 = vmin.f32 %v216, 255.0
    %v218 = vcvt.f32.s32.to.zero.pseudo %v217
    %v219 = vpack.c.b16 %v218, %v218
    %v220 = vpack.c.b8 %v219, %v219
    %vm221 = vcmask 1041409
    %vm222 = vsmask.f32 7943
    %vm223 = vmand %vm221, %vm222
    %v224 = vld [vmem:[#allocation8 + $0x2] sm:$0x2]
    %v225 = vsel %vm223, %v220, %v224
    %226 = vst [vmem:[#allocation8 + $0x2] sm:$0x2] %v225
    // Predicated region
    $region26: #{tpu_custom_call.1} parent=1 // pred_check
      _
    $region27: #{tpu_custom_call.1} parent=1 // pred_check_branch
      %228 = sbr.rel (0) target = $region29
    $region28: #{tpu_custom_call.1} parent=1 // pred_region
      %s230 = ssub.s32 64, 64
      %231 = vsyncadd [#allocation4], %s230
      %s232 = sshll.u32 [#allocation8], 4
      %s233 = int_to_ptr.vmem [resolvable:$true] %s232
      %238 = dma.vmem_to_hbm [thread:$0]  %s233, 64, %s3, [#allocation4], 32, 32, 2
    $region29: #{tpu_custom_call.1} parent=1 // pred_fallthru
      _
    // Predicated region
    $region30: #{tpu_custom_call.1} parent=1 // pred_check
      _
    $region31: #{tpu_custom_call.1} parent=1 // pred_check_branch
      %240 = sbr.rel (0) target = $region33
    $region32: #{tpu_custom_call.1} parent=1 // pred_region
      %241 = dma.done [#allocation4], 64
    $region33: #{tpu_custom_call.1} parent=1 // pred_fallthru
      _
    %242 = vsyncpa [#allocation3], 1
    %243 = vsyncpa [#allocation6], 1
    %244 = vsyncpa [#allocation4], 1

</llo_original>
